<compile_context>
chip_gen: v6e
topology: v6e:2x2x1
jax: 0.10.0
libtpu: 0.0.40
codegen_flags: <defaults>
</compile_context>

<pallas_src>
import numpy as np
import jax
import jax.numpy as jnp
from jax.experimental import pallas as pl
from jax.experimental.pallas import tpu as pltpu

_PREC = jax.lax.Precision.HIGHEST


def ga2_kernel(x_ref, m2_ref, row_ref, col_ref, dist_ref, o_ref):
    N = x_ref.shape[0]
    E = row_ref.shape[1]          # padded edge count (multiple of 128)
    f32 = jnp.float32

    x = x_ref[...]                # (N, C_in) node features
    m2 = m2_ref[...]              # (C_in, 2)  folded [W@att_sum | W@1]
    row = row_ref[...]            # (1, E) int32 (pad entries == N)
    col = col_ref[...]            # (1, E) int32 (pad entries == N)
    dist = dist_ref[...]          # (1, E) f32   (pad entries == 1.0)

    # ---- folded projection (only matmul, value-carrying, f32/HIGHEST) -------
    node_sf = jnp.dot(x, m2, precision=_PREC,
                      preferred_element_type=f32)        # (N, 2)
    node_score = node_sf[:, 0:1]                         # (N, 1) logit per node
    node_fsum = node_sf[:, 1:2]                          # (N, 1) sum_h proj

    # ---- single (N, E) structural layout: node on sublanes, edge on lanes ---
    n_sub = jax.lax.broadcasted_iota(jnp.int32, (N, E), 0)
    e_lane = jax.lax.broadcasted_iota(jnp.int32, (N, E), 1)
    row_b = row == n_sub                                 # (N, E) bool
    col_b = col == n_sub                                 # (N, E) bool

    zero = f32(0.0)
    neg = f32(-1e30)   # sentinel, intentionally NOT -inf

    # node -> edge gathers: sublane reduce -> lane-dense (1, E) rows
    s_e = jnp.sum(jnp.where(row_b, node_score, zero), axis=0, keepdims=True)
    fsum_e = jnp.sum(jnp.where(row_b, node_fsum, zero), axis=0, keepdims=True)

    # ---- segment softmax over `row` (gnn.softmax), no (E,E) anywhere --------
    node_max = jnp.max(jnp.where(row_b, s_e, neg), axis=1, keepdims=True)   # (N,1)
    gmax_e = jnp.sum(jnp.where(row_b, node_max, zero), axis=0, keepdims=True)
    e_s = jnp.exp(s_e - gmax_e)                                             # (1,E)
    node_den = jnp.sum(jnp.where(row_b, e_s, zero), axis=1, keepdims=True)  # (N,1)
    denom_e = jnp.sum(jnp.where(row_b, node_den, zero), axis=0, keepdims=True)

    # v = alpha * sum_{2h}(feat2) / dist = (2 * e_s * fsum) / (denom * dist)
    v_e = (2.0 * e_s * fsum_e) / (denom_e * dist)                           # (1,E)

    # out[e] = v[row[e]] - v[col[e]] : per-edge v indexed with node ids
    # (buggy-reference-faithful; only the first N lanes of v_e are addressed).
    v_n = jnp.sum(jnp.where(e_lane == n_sub, v_e, zero),
                  axis=1, keepdims=True)                                    # (N,1)
    o_ref[...] = jnp.sum(jnp.where(row_b, v_n, zero)
                         - jnp.where(col_b, v_n, zero),
                         axis=0, keepdims=True)                             # (1,E)


def graph_attention2(x, weight, attention, row, col, edge_dist,
                     heads, out_channels):
    assert heads == 1
    N, _ = x.shape
    E = row.shape[0]
    h = out_channels
    assert E >= N, "reference's v[row]-v[col] indexing requires E >= N"
    assert E % h == 0, "final .view(-1, h) requires E % out_channels == 0"

    W = jnp.squeeze(weight, 0).astype(jnp.float32)        # (C_in, h)
    att = jnp.squeeze(attention, 0).astype(jnp.float32)   # (2h, 1)
    att_sum = att[:h, 0] + att[h:, 0]                     # (h,) concat folded
    # folded projection: [W @ att_sum | W @ 1_h] -> (C_in, 2)
    m2 = jnp.stack([jnp.dot(W, att_sum, precision=_PREC),
                    jnp.sum(W, axis=1)], axis=1).astype(jnp.float32)

    # lane-dense edge axis: pad to a multiple of 128 (pad edges match no node)
    E_pad = ((E + 127) // 128) * 128
    pad = E_pad - E
    row_r = jnp.pad(row.astype(jnp.int32), (0, pad),
                    constant_values=N).reshape(1, E_pad)
    col_r = jnp.pad(col.astype(jnp.int32), (0, pad),
                    constant_values=N).reshape(1, E_pad)
    dist_r = jnp.pad(edge_dist.astype(jnp.float32).reshape(-1), (0, pad),
                     constant_values=1.0).reshape(1, E_pad)

    out_row = pl.pallas_call(
        ga2_kernel,
        out_shape=jax.ShapeDtypeStruct((1, E_pad), jnp.float32),
        in_specs=[pl.BlockSpec(memory_space=pltpu.MemorySpace.VMEM)] * 5,
        out_specs=pl.BlockSpec(memory_space=pltpu.MemorySpace.VMEM),
    )(x.astype(jnp.float32), m2, row_r, col_r, dist_r)

    # final `.view(-1, h)`
    return out_row[0, :E].reshape(-1, h)


def ga2_reference(x, weight, attention, row, col, dist, out_channels):
    """Pure-JAX reference (gather/segment based) for correctness check."""
    W = jnp.squeeze(weight, 0)
    att = jnp.squeeze(attention, 0)
    N = x.shape[0]
    out_proj = jnp.dot(x, W, precision=_PREC)
    feat = out_proj[row]
    feat2 = jnp.concatenate([feat, feat], axis=-1)
    s = jnp.dot(feat2, att, precision=_PREC)[:, 0]
    seg_max = jax.ops.segment_max(s, row, num_segments=N)
    e_s = jnp.exp(s - seg_max[row])
    denom = jax.ops.segment_sum(e_s, row, num_segments=N)
    alpha = e_s / denom[row]
    w = feat2 * alpha[:, None]
    v = jnp.sum(w, axis=1, keepdims=True) / dist
    final = v[row] - v[col]
    return final.reshape(-1, out_channels)


if __name__ == "__main__":
    N, C_in, C_out, heads, PDIM = 16, 4, 8, 1, 3

    key = jax.random.PRNGKey(0)
    k1, k2, k3, k4 = jax.random.split(key, 4)
    x = jax.random.normal(k1, (N, C_in), jnp.float32)
    pos = jax.random.normal(k2, (N, PDIM), jnp.float32)

    # deterministic xavier-uniform-style init (shapes from __init__)
    wb = float(np.sqrt(6.0 / (C_in + C_out)))
    weight = jax.random.uniform(k3, (heads, C_in, C_out), jnp.float32, -wb, wb)
    ab = float(np.sqrt(6.0 / (2 * C_out + 1)))
    attention = jax.random.uniform(k4, (heads, 2 * C_out, 1), jnp.float32, -ab, ab)

    # --- graph (no self loops in the raw edge list) ---
    src, dst = [], []
    for i in range(N):
        src.append(i); dst.append((i + 1) % N)
    for i in range(8):
        src.append(i); dst.append((i + 3) % N)
    row0 = np.asarray(src, np.int32)
    col0 = np.asarray(dst, np.int32)

    # edge_dist = ||pos[col] - pos[row]||_2 on the original edges (glue)
    pos_np = np.asarray(pos)
    dist0 = np.linalg.norm(pos_np[col0] - pos_np[row0], axis=-1).astype(np.float32)

    # gnn.sort_edge_index (by row, then col), gnn.remove_self_loops (no-op here),
    # gnn.add_self_loops (appended at the end, fill_value=1.0 for edge_dist)
    perm = np.lexsort((col0, row0))
    row_s, col_s, dist_s = row0[perm], col0[perm], dist0[perm]
    row = np.concatenate([row_s, np.arange(N, dtype=np.int32)]).astype(np.int32)
    col = np.concatenate([col_s, np.arange(N, dtype=np.int32)]).astype(np.int32)
    dist = np.concatenate([dist_s, np.ones(N, np.float32)]).astype(np.float32)
    E = row.shape[0]
    assert E % C_out == 0, "final .view(-1, h) requires E % out_channels == 0"

    row_j = jnp.asarray(row)
    col_j = jnp.asarray(col)
    dist_j = jnp.asarray(dist)

    out = graph_attention2(x, weight, attention, row_j, col_j, dist_j,
                           heads, C_out)
    out = jax.block_until_ready(out)

    ref = ga2_reference(x, weight, attention, row_j, col_j,
                        dist_j.reshape(E, 1), C_out)
    np.testing.assert_allclose(np.asarray(out), np.asarray(ref),
                               rtol=1e-4, atol=3e-5)
    print("KERNEL_OK")
</pallas_src>

<mosaic_0001>
module attributes {stable_mosaic.version = 11 : i64} {
  func.func @ga2_kernel(%arg0: memref<16x4xf32, #tpu.memory_space<vmem>>, %arg1: memref<4x2xf32, #tpu.memory_space<vmem>>, %arg2: memref<1x128xi32, #tpu.memory_space<vmem>>, %arg3: memref<1x128xi32, #tpu.memory_space<vmem>>, %arg4: memref<1x128xf32, #tpu.memory_space<vmem>>, %arg5: memref<1x128xf32, #tpu.memory_space<vmem>>) attributes {dimension_semantics = [], scalar_prefetch = 0 : i64, scratch_operands = 0 : i64, tpu.core_type = #tpu.core_type<tc>} {
    %c0 = arith.constant 0 : index
    %c0_0 = arith.constant 0 : index
    %0 = vector.load %arg0[%c0, %c0_0] : memref<16x4xf32, #tpu.memory_space<vmem>>, vector<16x4xf32>
    %c0_1 = arith.constant 0 : index
    %c0_2 = arith.constant 0 : index
    %1 = vector.load %arg1[%c0_1, %c0_2] : memref<4x2xf32, #tpu.memory_space<vmem>>, vector<4x2xf32>
    %c0_3 = arith.constant 0 : index
    %c0_4 = arith.constant 0 : index
    %2 = vector.load %arg2[%c0_3, %c0_4] : memref<1x128xi32, #tpu.memory_space<vmem>>, vector<1x128xi32>
    %c0_5 = arith.constant 0 : index
    %c0_6 = arith.constant 0 : index
    %3 = vector.load %arg3[%c0_5, %c0_6] : memref<1x128xi32, #tpu.memory_space<vmem>>, vector<1x128xi32>
    %c0_7 = arith.constant 0 : index
    %c0_8 = arith.constant 0 : index
    %4 = vector.load %arg4[%c0_7, %c0_8] : memref<1x128xf32, #tpu.memory_space<vmem>>, vector<1x128xf32>
    %cst = arith.constant dense<0.000000e+00> : vector<16x2xf32>
    %5 = tpu.matmul %0, %1, %cst {dimension_numbers = #tpu.dot_dimension_numbers<[1], [0], [0], [1], [0, 0, 1, 1], [], []>, precision = #tpu.contract_precision<fp32>} : vector<16x4xf32>, vector<4x2xf32>, vector<16x2xf32> -> vector<16x2xf32>
    %6 = vector.extract_strided_slice %5 {offsets = [0, 0], sizes = [16, 1], strides = [1, 1]} : vector<16x2xf32> to vector<16x1xf32>
    %7 = vector.extract_strided_slice %5 {offsets = [0, 1], sizes = [16, 1], strides = [1, 1]} : vector<16x2xf32> to vector<16x1xf32>
    %8 = tpu.iota {dimensions = array<i32: 0>} : vector<16x128xi32>
    %9 = tpu.iota {dimensions = array<i32: 1>} : vector<16x128xi32>
    %10 = vector.broadcast %2 : vector<1x128xi32> to vector<16x128xi32>
    %11 = arith.cmpi eq, %10, %8 : vector<16x128xi32>
    %12 = vector.broadcast %3 : vector<1x128xi32> to vector<16x128xi32>
    %13 = arith.cmpi eq, %12, %8 : vector<16x128xi32>
    %cst_9 = arith.constant 0.000000e+00 : f32
    %14 = vector.shape_cast %6 : vector<16x1xf32> to vector<16x1xf32>
    %15 = vector.broadcast %14 : vector<16x1xf32> to vector<16x128xf32>
    %16 = vector.broadcast %cst_9 : f32 to vector<16x128xf32>
    %17 = arith.select %11, %15, %16 : vector<16x128xi1>, vector<16x128xf32>
    %cst_10 = arith.constant dense<0.000000e+00> : vector<128xf32>
    %18 = vector.multi_reduction <add>, %17, %cst_10 [0] : vector<16x128xf32> to vector<128xf32>
    %19 = vector.shape_cast %18 : vector<128xf32> to vector<1x128xf32>
    %cst_11 = arith.constant 0.000000e+00 : f32
    %20 = vector.shape_cast %7 : vector<16x1xf32> to vector<16x1xf32>
    %21 = vector.broadcast %20 : vector<16x1xf32> to vector<16x128xf32>
    %22 = vector.broadcast %cst_11 : f32 to vector<16x128xf32>
    %23 = arith.select %11, %21, %22 : vector<16x128xi1>, vector<16x128xf32>
    %cst_12 = arith.constant dense<0.000000e+00> : vector<128xf32>
    %24 = vector.multi_reduction <add>, %23, %cst_12 [0] : vector<16x128xf32> to vector<128xf32>
    %25 = vector.shape_cast %24 : vector<128xf32> to vector<1x128xf32>
    %cst_13 = arith.constant -1.000000e+30 : f32
    %26 = vector.shape_cast %19 : vector<1x128xf32> to vector<1x128xf32>
    %27 = vector.broadcast %26 : vector<1x128xf32> to vector<16x128xf32>
    %28 = vector.broadcast %cst_13 : f32 to vector<16x128xf32>
    %29 = arith.select %11, %27, %28 : vector<16x128xi1>, vector<16x128xf32>
    %cst_14 = arith.constant dense<0xFF800000> : vector<16xf32>
    %30 = vector.multi_reduction <maximumf>, %29, %cst_14 [1] : vector<16x128xf32> to vector<16xf32>
    %31 = vector.shape_cast %30 : vector<16xf32> to vector<16x1xf32>
    %cst_15 = arith.constant 0.000000e+00 : f32
    %32 = vector.shape_cast %31 : vector<16x1xf32> to vector<16x1xf32>
    %33 = vector.broadcast %32 : vector<16x1xf32> to vector<16x128xf32>
    %34 = vector.broadcast %cst_15 : f32 to vector<16x128xf32>
    %35 = arith.select %11, %33, %34 : vector<16x128xi1>, vector<16x128xf32>
    %cst_16 = arith.constant dense<0.000000e+00> : vector<128xf32>
    %36 = vector.multi_reduction <add>, %35, %cst_16 [0] : vector<16x128xf32> to vector<128xf32>
    %37 = vector.shape_cast %36 : vector<128xf32> to vector<1x128xf32>
    %38 = arith.subf %19, %37 : vector<1x128xf32>
    %39 = math.exp %38 : vector<1x128xf32>
    %cst_17 = arith.constant 0.000000e+00 : f32
    %40 = vector.shape_cast %39 : vector<1x128xf32> to vector<1x128xf32>
    %41 = vector.broadcast %40 : vector<1x128xf32> to vector<16x128xf32>
    %42 = vector.broadcast %cst_17 : f32 to vector<16x128xf32>
    %43 = arith.select %11, %41, %42 : vector<16x128xi1>, vector<16x128xf32>
    %cst_18 = arith.constant dense<0.000000e+00> : vector<16xf32>
    %44 = vector.multi_reduction <add>, %43, %cst_18 [1] : vector<16x128xf32> to vector<16xf32>
    %45 = vector.shape_cast %44 : vector<16xf32> to vector<16x1xf32>
    %cst_19 = arith.constant 0.000000e+00 : f32
    %46 = vector.shape_cast %45 : vector<16x1xf32> to vector<16x1xf32>
    %47 = vector.broadcast %46 : vector<16x1xf32> to vector<16x128xf32>
    %48 = vector.broadcast %cst_19 : f32 to vector<16x128xf32>
    %49 = arith.select %11, %47, %48 : vector<16x128xi1>, vector<16x128xf32>
    %cst_20 = arith.constant dense<0.000000e+00> : vector<128xf32>
    %50 = vector.multi_reduction <add>, %49, %cst_20 [0] : vector<16x128xf32> to vector<128xf32>
    %51 = vector.shape_cast %50 : vector<128xf32> to vector<1x128xf32>
    %cst_21 = arith.constant 2.000000e+00 : f32
    %52 = vector.broadcast %cst_21 : f32 to vector<1x128xf32>
    %53 = arith.mulf %52, %39 : vector<1x128xf32>
    %54 = arith.mulf %53, %25 : vector<1x128xf32>
    %55 = arith.mulf %51, %4 : vector<1x128xf32>
    %56 = arith.divf %54, %55 : vector<1x128xf32>
    %57 = arith.cmpi eq, %9, %8 : vector<16x128xi32>
    %cst_22 = arith.constant 0.000000e+00 : f32
    %58 = vector.shape_cast %56 : vector<1x128xf32> to vector<1x128xf32>
    %59 = vector.broadcast %58 : vector<1x128xf32> to vector<16x128xf32>
    %60 = vector.broadcast %cst_22 : f32 to vector<16x128xf32>
    %61 = arith.select %57, %59, %60 : vector<16x128xi1>, vector<16x128xf32>
    %cst_23 = arith.constant dense<0.000000e+00> : vector<16xf32>
    %62 = vector.multi_reduction <add>, %61, %cst_23 [1] : vector<16x128xf32> to vector<16xf32>
    %63 = vector.shape_cast %62 : vector<16xf32> to vector<16x1xf32>
    %cst_24 = arith.constant 0.000000e+00 : f32
    %64 = vector.shape_cast %63 : vector<16x1xf32> to vector<16x1xf32>
    %65 = vector.broadcast %64 : vector<16x1xf32> to vector<16x128xf32>
    %66 = vector.broadcast %cst_24 : f32 to vector<16x128xf32>
    %67 = arith.select %11, %65, %66 : vector<16x128xi1>, vector<16x128xf32>
    %cst_25 = arith.constant 0.000000e+00 : f32
    %68 = vector.shape_cast %63 : vector<16x1xf32> to vector<16x1xf32>
    %69 = vector.broadcast %68 : vector<16x1xf32> to vector<16x128xf32>
    %70 = vector.broadcast %cst_25 : f32 to vector<16x128xf32>
    %71 = arith.select %13, %69, %70 : vector<16x128xi1>, vector<16x128xf32>
    %72 = arith.subf %67, %71 : vector<16x128xf32>
    %cst_26 = arith.constant dense<0.000000e+00> : vector<128xf32>
    %73 = vector.multi_reduction <add>, %72, %cst_26 [0] : vector<16x128xf32> to vector<128xf32>
    %74 = vector.shape_cast %73 : vector<128xf32> to vector<1x128xf32>
    %c0_27 = arith.constant 0 : index
    %c0_28 = arith.constant 0 : index
    %75 = vector.load %arg5[%c0_27, %c0_28] : memref<1x128xf32, #tpu.memory_space<vmem>>, vector<1x128xf32>
    tpu.vector_store %arg5[%c0_27, %c0_28], %74 {strides = array<i32>} : memref<1x128xf32, #tpu.memory_space<vmem>>, vector<1x128xf32>,
    return
  }
}

</mosaic_0001>

<llo_original>
// kernel: tpu_custom_call.1
$region0: #{tpu_custom_call.1}
  #allocation0 [shape = 'u32[]', space=smem, size = 0x4, offset = 0x4, fixed_abs, tag = 'smem constant byte address 0x4 - core index']
  #allocation1 [shape = 'u32[144,128]{1,0:T(1,128)}', space=vmem, size = 0x12000, scoped, tag = 'internal scratch']
  %s0 = inlined_call_operand.vmem [shape: f32[16,4], index: 0, kind: input, shape index: {}]
  %s1 = inlined_call_operand.vmem [shape: f32[4,2], index: 1, kind: input, shape index: {}]
  %s2 = inlined_call_operand.vmem [shape: s32[1,128], index: 2, kind: input, shape index: {}]
  %s3 = inlined_call_operand.vmem [shape: s32[1,128], index: 3, kind: input, shape index: {}]
  %s4 = inlined_call_operand.vmem [shape: f32[1,128], index: 4, kind: input, shape index: {}]
  %s5 = inlined_call_operand.hbm [shape: f32[1,128], index: 5, kind: output, shape index: {}]
  %s6 = sld [smem:[#allocation0]]
  $region30: #{tpu_custom_call.1} parent=0
    _
  %s8 = ssub.s32 1, %s6
  %s9 = scalar_select 0, %s8, %s6
  $region1: #{tpu_custom_call.1} parent=0
    #allocation2 [shape = 'u8[512]{0}', space=vmem, size = 0x400, scoped, tag = 'output window, operand 0, single buffered']
    #allocation3 [shape = 's32[1]{0}', space=sflag, size = 0x4, scoped, tag = 'scoped memory for tpu_custom_call.1']
    %10 = vsyncpa [#allocation3], 0
    // Predicated region
    $region2: #{tpu_custom_call.1} parent=1 // pred_check
      _
    $region3: #{tpu_custom_call.1} parent=1 // pred_check_branch
      %12 = sbr.rel (0) target = $region5
    $region4: #{tpu_custom_call.1} parent=1 // pred_region
      _
    $region5: #{tpu_custom_call.1} parent=1 // pred_fallthru
      _
    // Predicated region
    $region6: #{tpu_custom_call.1} parent=1 // pred_check
      _
    $region7: #{tpu_custom_call.1} parent=1 // pred_check_branch
      %14 = sbr.rel (0) target = $region9
    $region8: #{tpu_custom_call.1} parent=1 // pred_region
      _
    $region9: #{tpu_custom_call.1} parent=1 // pred_fallthru
      _
    // Predicated region
    $region10: #{tpu_custom_call.1} parent=1 // pred_check
      _
    $region11: #{tpu_custom_call.1} parent=1 // pred_check_branch
      %16 = sbr.rel (0) target = $region13
    $region12: #{tpu_custom_call.1} parent=1 // pred_region
      _
    $region13: #{tpu_custom_call.1} parent=1 // pred_fallthru
      _
    // Predicated region
    $region14: #{tpu_custom_call.1} parent=1 // pred_check
      _
    $region15: #{tpu_custom_call.1} parent=1 // pred_check_branch
      %18 = sbr.rel (0) target = $region17
    $region16: #{tpu_custom_call.1} parent=1 // pred_region
      _
    $region17: #{tpu_custom_call.1} parent=1 // pred_fallthru
      _
    // Predicated region
    $region18: #{tpu_custom_call.1} parent=1 // pred_check
      _
    $region19: #{tpu_custom_call.1} parent=1 // pred_check_branch
      %20 = sbr.rel (0) target = $region21
    $region20: #{tpu_custom_call.1} parent=1 // pred_region
      _
    $region21: #{tpu_custom_call.1} parent=1 // pred_fallthru
      _
    %v21 = vld [vmem:[%s0] sm:$0xff]
    %v22 = vld [vmem:[%s0 + $0x8] sm:$0xff]
    %v23 = vld [vmem:[%s1] sm:$0xf]
    %v24 = vld [vmem:[%s2] sm:$0x1]
    %v25 = vld [vmem:[%s3] sm:$0x1]
    %v26 = vld [vmem:[%s4] sm:$0x1]
    %vm27 = vcmask 31744
    %v29 = vsel %vm27, %v21, 0
    %v32 = vsel %vm27, %v22, 0
    %vm34 = vcmask 1043456
    %v36 = vsel %vm34, %v23, 0
    %38 = vmatprep.subr.mxu0 0.0
    %39 = vmatpush1.msra.mxu0 0.0
    %40 = vmatprep.subr.mxu0 0.0
    %41 = vmatpush1.msra.mxu0 0.0
    %42 = vmatprep.subr.mxu0 0.0
    %43 = vmatpush1.msra.mxu0 0.0
    %44 = vmatprep.subr.mxu0 0.0
    %45 = vmatpush1.msra.mxu0 0.0
    %46 = vmatprep.subr.mxu0 0.0
    %47 = vmatpush1.msra.mxu0 0.0
    %48 = vmatprep.subr.mxu0 0.0
    %49 = vmatpush1.msra.mxu0 0.0
    %50 = vmatprep.subr.mxu0 0.0
    %51 = vmatpush1.msra.mxu0 0.0
    %52 = vmatprep.subr.mxu0 0.0
    %53 = vmatpush1.msra.mxu0 0.0
    %54 = vmatprep.subr.mxu0 0.0
    %55 = vmatpush1.msra.mxu0 0.0
    %56 = vmatprep.subr.mxu0 0.0
    %57 = vmatpush1.msra.mxu0 0.0
    %58 = vmatprep.subr.mxu0 0.0
    %59 = vmatpush1.msra.mxu0 0.0
    %60 = vmatprep.subr.mxu0 0.0
    %61 = vmatpush1.msra.mxu0 0.0
    %62 = vmatprep.subr.mxu0 0.0
    %63 = vmatpush1.msra.mxu0 0.0
    %64 = vmatprep.subr.mxu0 0.0
    %65 = vmatpush1.msra.mxu0 0.0
    %66 = vmatprep.subr.mxu0 0.0
    %67 = vmatpush1.msra.mxu0 0.0
    %68 = vmatprep.subr.mxu0 0.0
    %v69 = vand.u32 %v36, 4294901760
    %70 = vmatpush1.msra.mxu0 %v69
    %71 = vmatprep.subr.mxu0 0.0
    %72 = vmatpush2.msra.mxu0 0.0
    %73 = vmatprep.subr.mxu0 0.0
    %74 = vmatpush2.msra.mxu0 0.0
    %75 = vmatprep.subr.mxu0 0.0
    %76 = vmatpush2.msra.mxu0 0.0
    %77 = vmatprep.subr.mxu0 0.0
    %78 = vmatpush2.msra.mxu0 0.0
    %79 = vmatprep.subr.mxu0 0.0
    %80 = vmatpush2.msra.mxu0 0.0
    %81 = vmatprep.subr.mxu0 0.0
    %82 = vmatpush2.msra.mxu0 0.0
    %83 = vmatprep.subr.mxu0 0.0
    %84 = vmatpush2.msra.mxu0 0.0
    %85 = vmatprep.subr.mxu0 0.0
    %86 = vmatpush2.msra.mxu0 0.0
    %87 = vmatprep.subr.mxu0 0.0
    %88 = vmatpush2.msra.mxu0 0.0
    %89 = vmatprep.subr.mxu0 0.0
    %90 = vmatpush2.msra.mxu0 0.0
    %91 = vmatprep.subr.mxu0 0.0
    %92 = vmatpush2.msra.mxu0 0.0
    %93 = vmatprep.subr.mxu0 0.0
    %94 = vmatpush2.msra.mxu0 0.0
    %95 = vmatprep.subr.mxu0 0.0
    %96 = vmatpush2.msra.mxu0 0.0
    %97 = vmatprep.subr.mxu0 0.0
    %98 = vmatpush2.msra.mxu0 0.0
    %99 = vmatprep.subr.mxu0 0.0
    %100 = vmatpush2.msra.mxu0 0.0
    %101 = vmatprep.subr.mxu0 0.0
    %102 = vmatpush2.msra.mxu0 0.0
    %103 = vmatprep.mubr.f32.mxu0 0.0
    %v104 = vand.u32 %v29, 4294901760
    %v105 = vsub.f32 %v29, %v104
    %v106 = vand.u32 %v105, 4294901760
    %v107 = vsub.f32 %v105, %v106
    %v108 = vand.u32 %v107, 4294901760
    %109 = vmatmul.mubr.f32.gmra.mxu0 %v108
    %v110 = vpop.f32.mrf.mxu0
    %v111 = vadd.f32 0.0, %v110
    %v112 = vpop.f32.mrf.mxu0
    %113 = vmatprep.mubr.f32.mxu0 0.0
    %v114 = vand.u32 %v32, 4294901760
    %v115 = vsub.f32 %v32, %v114
    %v116 = vand.u32 %v115, 4294901760
    %v117 = vsub.f32 %v115, %v116
    %v118 = vand.u32 %v117, 4294901760
    %119 = vmatmul.mubr.f32.gmra.mxu0 %v118
    %v120 = vpop.f32.mrf.mxu0
    %v121 = vadd.f32 0.0, %v120
    %v122 = vpop.f32.mrf.mxu0
    %123 = vdwg.mxu0
    %124 = vmatprep.subr.mxu0 0.0
    %125 = vmatpush1.msra.mxu0 0.0
    %126 = vmatprep.subr.mxu0 0.0
    %127 = vmatpush1.msra.mxu0 0.0
    %128 = vmatprep.subr.mxu0 0.0
    %129 = vmatpush1.msra.mxu0 0.0
    %130 = vmatprep.subr.mxu0 0.0
    %131 = vmatpush1.msra.mxu0 0.0
    %132 = vmatprep.subr.mxu0 0.0
    %133 = vmatpush1.msra.mxu0 0.0
    %134 = vmatprep.subr.mxu0 0.0
    %135 = vmatpush1.msra.mxu0 0.0
    %136 = vmatprep.subr.mxu0 0.0
    %137 = vmatpush1.msra.mxu0 0.0
    %138 = vmatprep.subr.mxu0 0.0
    %139 = vmatpush1.msra.mxu0 0.0
    %140 = vmatprep.subr.mxu0 0.0
    %141 = vmatpush1.msra.mxu0 0.0
    %142 = vmatprep.subr.mxu0 0.0
    %143 = vmatpush1.msra.mxu0 0.0
    %144 = vmatprep.subr.mxu0 0.0
    %145 = vmatpush1.msra.mxu0 0.0
    %146 = vmatprep.subr.mxu0 0.0
    %147 = vmatpush1.msra.mxu0 0.0
    %148 = vmatprep.subr.mxu0 0.0
    %149 = vmatpush1.msra.mxu0 0.0
    %150 = vmatprep.subr.mxu0 0.0
    %151 = vmatpush1.msra.mxu0 0.0
    %152 = vmatprep.subr.mxu0 0.0
    %153 = vmatpush1.msra.mxu0 0.0
    %154 = vmatprep.subr.mxu0 0.0
    %v155 = vand.u32 %v36, 4294901760
    %v156 = vsub.f32 %v36, %v155
    %v157 = vand.u32 %v156, 4294901760
    %v158 = vsub.f32 %v156, %v157
    %v159 = vand.u32 %v158, 4294901760
    %160 = vmatpush1.msra.mxu0 %v159
    %161 = vmatprep.subr.mxu0 0.0
    %162 = vmatpush2.msra.mxu0 0.0
    %163 = vmatprep.subr.mxu0 0.0
    %164 = vmatpush2.msra.mxu0 0.0
    %165 = vmatprep.subr.mxu0 0.0
    %166 = vmatpush2.msra.mxu0 0.0
    %167 = vmatprep.subr.mxu0 0.0
    %168 = vmatpush2.msra.mxu0 0.0
    %169 = vmatprep.subr.mxu0 0.0
    %170 = vmatpush2.msra.mxu0 0.0
    %171 = vmatprep.subr.mxu0 0.0
    %172 = vmatpush2.msra.mxu0 0.0
    %173 = vmatprep.subr.mxu0 0.0
    %174 = vmatpush2.msra.mxu0 0.0
    %175 = vmatprep.subr.mxu0 0.0
    %176 = vmatpush2.msra.mxu0 0.0
    %177 = vmatprep.subr.mxu0 0.0
    %178 = vmatpush2.msra.mxu0 0.0
    %179 = vmatprep.subr.mxu0 0.0
    %180 = vmatpush2.msra.mxu0 0.0
    %181 = vmatprep.subr.mxu0 0.0
    %182 = vmatpush2.msra.mxu0 0.0
    %183 = vmatprep.subr.mxu0 0.0
    %184 = vmatpush2.msra.mxu0 0.0
    %185 = vmatprep.subr.mxu0 0.0
    %186 = vmatpush2.msra.mxu0 0.0
    %187 = vmatprep.subr.mxu0 0.0
    %188 = vmatpush2.msra.mxu0 0.0
    %189 = vmatprep.subr.mxu0 0.0
    %190 = vmatpush2.msra.mxu0 0.0
    %191 = vmatprep.subr.mxu0 0.0
    %192 = vmatpush2.msra.mxu0 0.0
    %193 = vmatprep.mubr.f32.mxu0 0.0
    %v194 = vand.u32 %v29, 4294901760
    %195 = vmatmul.mubr.f32.gmra.mxu0 %v194
    %v196 = vpop.f32.mrf.mxu0
    %v197 = vadd.f32 %v111, %v196
    %v198 = vpop.f32.mrf.mxu0
    %199 = vmatprep.mubr.f32.mxu0 0.0
    %v200 = vand.u32 %v32, 4294901760
    %201 = vmatmul.mubr.f32.gmra.mxu0 %v200
    %v202 = vpop.f32.mrf.mxu0
    %v203 = vadd.f32 %v121, %v202
    %v204 = vpop.f32.mrf.mxu0
    %205 = vdwg.mxu0
    %206 = vmatprep.subr.mxu0 0.0
    %207 = vmatpush1.msra.mxu0 0.0
    %208 = vmatprep.subr.mxu0 0.0
    %209 = vmatpush1.msra.mxu0 0.0
    %210 = vmatprep.subr.mxu0 0.0
    %211 = vmatpush1.msra.mxu0 0.0
    %212 = vmatprep.subr.mxu0 0.0
    %213 = vmatpush1.msra.mxu0 0.0
    %214 = vmatprep.subr.mxu0 0.0
    %215 = vmatpush1.msra.mxu0 0.0
    %216 = vmatprep.subr.mxu0 0.0
    %217 = vmatpush1.msra.mxu0 0.0
    %218 = vmatprep.subr.mxu0 0.0
    %219 = vmatpush1.msra.mxu0 0.0
    %220 = vmatprep.subr.mxu0 0.0
    %221 = vmatpush1.msra.mxu0 0.0
    %222 = vmatprep.subr.mxu0 0.0
    %223 = vmatpush1.msra.mxu0 0.0
    %224 = vmatprep.subr.mxu0 0.0
    %225 = vmatpush1.msra.mxu0 0.0
    %226 = vmatprep.subr.mxu0 0.0
    %227 = vmatpush1.msra.mxu0 0.0
    %228 = vmatprep.subr.mxu0 0.0
    %229 = vmatpush1.msra.mxu0 0.0
    %230 = vmatprep.subr.mxu0 0.0
    %231 = vmatpush1.msra.mxu0 0.0
    %232 = vmatprep.subr.mxu0 0.0
    %233 = vmatpush1.msra.mxu0 0.0
    %234 = vmatprep.subr.mxu0 0.0
    %235 = vmatpush1.msra.mxu0 0.0
    %236 = vmatprep.subr.mxu0 0.0
    %v237 = vand.u32 %v36, 4294901760
    %v238 = vsub.f32 %v36, %v237
    %239 = vmatpush1.msra.mxu0 %v238
    %240 = vmatprep.subr.mxu0 0.0
    %241 = vmatpush2.msra.mxu0 0.0
    %242 = vmatprep.subr.mxu0 0.0
    %243 = vmatpush2.msra.mxu0 0.0
    %244 = vmatprep.subr.mxu0 0.0
    %245 = vmatpush2.msra.mxu0 0.0
    %246 = vmatprep.subr.mxu0 0.0
    %247 = vmatpush2.msra.mxu0 0.0
    %248 = vmatprep.subr.mxu0 0.0
    %249 = vmatpush2.msra.mxu0 0.0
    %250 = vmatprep.subr.mxu0 0.0
    %251 = vmatpush2.msra.mxu0 0.0
    %252 = vmatprep.subr.mxu0 0.0
    %253 = vmatpush2.msra.mxu0 0.0
    %254 = vmatprep.subr.mxu0 0.0
    %255 = vmatpush2.msra.mxu0 0.0
    %256 = vmatprep.subr.mxu0 0.0
    %257 = vmatpush2.msra.mxu0 0.0
    %258 = vmatprep.subr.mxu0 0.0
    %259 = vmatpush2.msra.mxu0 0.0
    %260 = vmatprep.subr.mxu0 0.0
    %261 = vmatpush2.msra.mxu0 0.0
    %262 = vmatprep.subr.mxu0 0.0
    %263 = vmatpush2.msra.mxu0 0.0
    %264 = vmatprep.subr.mxu0 0.0
    %265 = vmatpush2.msra.mxu0 0.0
    %266 = vmatprep.subr.mxu0 0.0
    %267 = vmatpush2.msra.mxu0 0.0
    %268 = vmatprep.subr.mxu0 0.0
    %269 = vmatpush2.msra.mxu0 0.0
    %270 = vmatprep.subr.mxu0 0.0
    %271 = vmatpush2.msra.mxu0 0.0
    %272 = vmatprep.mubr.f32.mxu0 0.0
    %v273 = vand.u32 %v29, 4294901760
    %v274 = vsub.f32 %v29, %v273
    %275 = vmatmul.mubr.f32.gmra.mxu0 %v274
    %v276 = vpop.f32.mrf.mxu0
    %v277 = vadd.f32 %v197, %v276
    %v278 = vpop.f32.mrf.mxu0
    %279 = vmatprep.mubr.f32.mxu0 0.0
    %v280 = vand.u32 %v32, 4294901760
    %v281 = vsub.f32 %v32, %v280
    %282 = vmatmul.mubr.f32.gmra.mxu0 %v281
    %v283 = vpop.f32.mrf.mxu0
    %v284 = vadd.f32 %v203, %v283
    %v285 = vpop.f32.mrf.mxu0
    %286 = vdwg.mxu0
    %287 = vmatprep.subr.mxu0 0.0
    %288 = vmatpush1.msra.mxu0 0.0
    %289 = vmatprep.subr.mxu0 0.0
    %290 = vmatpush1.msra.mxu0 0.0
    %291 = vmatprep.subr.mxu0 0.0
    %292 = vmatpush1.msra.mxu0 0.0
    %293 = vmatprep.subr.mxu0 0.0
    %294 = vmatpush1.msra.mxu0 0.0
    %295 = vmatprep.subr.mxu0 0.0
    %296 = vmatpush1.msra.mxu0 0.0
    %297 = vmatprep.subr.mxu0 0.0
    %298 = vmatpush1.msra.mxu0 0.0
    %299 = vmatprep.subr.mxu0 0.0
    %300 = vmatpush1.msra.mxu0 0.0
    %301 = vmatprep.subr.mxu0 0.0
    %302 = vmatpush1.msra.mxu0 0.0
    %303 = vmatprep.subr.mxu0 0.0
    %304 = vmatpush1.msra.mxu0 0.0
    %305 = vmatprep.subr.mxu0 0.0
    %306 = vmatpush1.msra.mxu0 0.0
    %307 = vmatprep.subr.mxu0 0.0
    %308 = vmatpush1.msra.mxu0 0.0
    %309 = vmatprep.subr.mxu0 0.0
    %310 = vmatpush1.msra.mxu0 0.0
    %311 = vmatprep.subr.mxu0 0.0
    %312 = vmatpush1.msra.mxu0 0.0
    %313 = vmatprep.subr.mxu0 0.0
    %314 = vmatpush1.msra.mxu0 0.0
    %315 = vmatprep.subr.mxu0 0.0
    %316 = vmatpush1.msra.mxu0 0.0
    %317 = vmatprep.subr.mxu0 0.0
    %v318 = vand.u32 %v36, 4294901760
    %319 = vmatpush1.msra.mxu0 %v318
    %320 = vmatprep.subr.mxu0 0.0
    %321 = vmatpush2.msra.mxu0 0.0
    %322 = vmatprep.subr.mxu0 0.0
    %323 = vmatpush2.msra.mxu0 0.0
    %324 = vmatprep.subr.mxu0 0.0
    %325 = vmatpush2.msra.mxu0 0.0
    %326 = vmatprep.subr.mxu0 0.0
    %327 = vmatpush2.msra.mxu0 0.0
    %328 = vmatprep.subr.mxu0 0.0
    %329 = vmatpush2.msra.mxu0 0.0
    %330 = vmatprep.subr.mxu0 0.0
    %331 = vmatpush2.msra.mxu0 0.0
    %332 = vmatprep.subr.mxu0 0.0
    %333 = vmatpush2.msra.mxu0 0.0
    %334 = vmatprep.subr.mxu0 0.0
    %335 = vmatpush2.msra.mxu0 0.0
    %336 = vmatprep.subr.mxu0 0.0
    %337 = vmatpush2.msra.mxu0 0.0
    %338 = vmatprep.subr.mxu0 0.0
    %339 = vmatpush2.msra.mxu0 0.0
    %340 = vmatprep.subr.mxu0 0.0
    %341 = vmatpush2.msra.mxu0 0.0
    %342 = vmatprep.subr.mxu0 0.0
    %343 = vmatpush2.msra.mxu0 0.0
    %344 = vmatprep.subr.mxu0 0.0
    %345 = vmatpush2.msra.mxu0 0.0
    %346 = vmatprep.subr.mxu0 0.0
    %347 = vmatpush2.msra.mxu0 0.0
    %348 = vmatprep.subr.mxu0 0.0
    %349 = vmatpush2.msra.mxu0 0.0
    %350 = vmatprep.subr.mxu0 0.0
    %351 = vmatpush2.msra.mxu0 0.0
    %352 = vmatprep.mubr.f32.mxu0 0.0
    %v353 = vand.u32 %v29, 4294901760
    %v354 = vsub.f32 %v29, %v353
    %v355 = vand.u32 %v354, 4294901760
    %356 = vmatmul.mubr.f32.gmra.mxu0 %v355
    %v357 = vpop.f32.mrf.mxu0
    %v358 = vadd.f32 %v277, %v357
    %v359 = vpop.f32.mrf.mxu0
    %360 = vmatprep.mubr.f32.mxu0 0.0
    %v361 = vand.u32 %v32, 4294901760
    %v362 = vsub.f32 %v32, %v361
    %v363 = vand.u32 %v362, 4294901760
    %364 = vmatmul.mubr.f32.gmra.mxu0 %v363
    %v365 = vpop.f32.mrf.mxu0
    %v366 = vadd.f32 %v284, %v365
    %v367 = vpop.f32.mrf.mxu0
    %368 = vdwg.mxu0
    %369 = vmatprep.subr.mxu0 0.0
    %370 = vmatpush1.msra.mxu0 0.0
    %371 = vmatprep.subr.mxu0 0.0
    %372 = vmatpush1.msra.mxu0 0.0
    %373 = vmatprep.subr.mxu0 0.0
    %374 = vmatpush1.msra.mxu0 0.0
    %375 = vmatprep.subr.mxu0 0.0
    %376 = vmatpush1.msra.mxu0 0.0
    %377 = vmatprep.subr.mxu0 0.0
    %378 = vmatpush1.msra.mxu0 0.0
    %379 = vmatprep.subr.mxu0 0.0
    %380 = vmatpush1.msra.mxu0 0.0
    %381 = vmatprep.subr.mxu0 0.0
    %382 = vmatpush1.msra.mxu0 0.0
    %383 = vmatprep.subr.mxu0 0.0
    %384 = vmatpush1.msra.mxu0 0.0
    %385 = vmatprep.subr.mxu0 0.0
    %386 = vmatpush1.msra.mxu0 0.0
    %387 = vmatprep.subr.mxu0 0.0
    %388 = vmatpush1.msra.mxu0 0.0
    %389 = vmatprep.subr.mxu0 0.0
    %390 = vmatpush1.msra.mxu0 0.0
    %391 = vmatprep.subr.mxu0 0.0
    %392 = vmatpush1.msra.mxu0 0.0
    %393 = vmatprep.subr.mxu0 0.0
    %394 = vmatpush1.msra.mxu0 0.0
    %395 = vmatprep.subr.mxu0 0.0
    %396 = vmatpush1.msra.mxu0 0.0
    %397 = vmatprep.subr.mxu0 0.0
    %398 = vmatpush1.msra.mxu0 0.0
    %399 = vmatprep.subr.mxu0 0.0
    %v400 = vand.u32 %v36, 4294901760
    %v401 = vsub.f32 %v36, %v400
    %v402 = vand.u32 %v401, 4294901760
    %403 = vmatpush1.msra.mxu0 %v402
    %404 = vmatprep.subr.mxu0 0.0
    %405 = vmatpush2.msra.mxu0 0.0
    %406 = vmatprep.subr.mxu0 0.0
    %407 = vmatpush2.msra.mxu0 0.0
    %408 = vmatprep.subr.mxu0 0.0
    %409 = vmatpush2.msra.mxu0 0.0
    %410 = vmatprep.subr.mxu0 0.0
    %411 = vmatpush2.msra.mxu0 0.0
    %412 = vmatprep.subr.mxu0 0.0
    %413 = vmatpush2.msra.mxu0 0.0
    %414 = vmatprep.subr.mxu0 0.0
    %415 = vmatpush2.msra.mxu0 0.0
    %416 = vmatprep.subr.mxu0 0.0
    %417 = vmatpush2.msra.mxu0 0.0
    %418 = vmatprep.subr.mxu0 0.0
    %419 = vmatpush2.msra.mxu0 0.0
    %420 = vmatprep.subr.mxu0 0.0
    %421 = vmatpush2.msra.mxu0 0.0
    %422 = vmatprep.subr.mxu0 0.0
    %423 = vmatpush2.msra.mxu0 0.0
    %424 = vmatprep.subr.mxu0 0.0
    %425 = vmatpush2.msra.mxu0 0.0
    %426 = vmatprep.subr.mxu0 0.0
    %427 = vmatpush2.msra.mxu0 0.0
    %428 = vmatprep.subr.mxu0 0.0
    %429 = vmatpush2.msra.mxu0 0.0
    %430 = vmatprep.subr.mxu0 0.0
    %431 = vmatpush2.msra.mxu0 0.0
    %432 = vmatprep.subr.mxu0 0.0
    %433 = vmatpush2.msra.mxu0 0.0
    %434 = vmatprep.subr.mxu0 0.0
    %435 = vmatpush2.msra.mxu0 0.0
    %436 = vmatprep.mubr.f32.mxu0 0.0
    %v437 = vand.u32 %v29, 4294901760
    %438 = vmatmul.mubr.f32.gmra.mxu0 %v437
    %v439 = vpop.f32.mrf.mxu0
    %v440 = vadd.f32 %v358, %v439
    %v441 = vpop.f32.mrf.mxu0
    %442 = vmatprep.mubr.f32.mxu0 0.0
    %v443 = vand.u32 %v32, 4294901760
    %444 = vmatmul.mubr.f32.gmra.mxu0 %v443
    %v445 = vpop.f32.mrf.mxu0
    %v446 = vadd.f32 %v366, %v445
    %v447 = vpop.f32.mrf.mxu0
    %448 = vdwg.mxu0
    %449 = vmatprep.subr.mxu0 0.0
    %450 = vmatpush1.msra.mxu0 0.0
    %451 = vmatprep.subr.mxu0 0.0
    %452 = vmatpush1.msra.mxu0 0.0
    %453 = vmatprep.subr.mxu0 0.0
    %454 = vmatpush1.msra.mxu0 0.0
    %455 = vmatprep.subr.mxu0 0.0
    %456 = vmatpush1.msra.mxu0 0.0
    %457 = vmatprep.subr.mxu0 0.0
    %458 = vmatpush1.msra.mxu0 0.0
    %459 = vmatprep.subr.mxu0 0.0
    %460 = vmatpush1.msra.mxu0 0.0
    %461 = vmatprep.subr.mxu0 0.0
    %462 = vmatpush1.msra.mxu0 0.0
    %463 = vmatprep.subr.mxu0 0.0
    %464 = vmatpush1.msra.mxu0 0.0
    %465 = vmatprep.subr.mxu0 0.0
    %466 = vmatpush1.msra.mxu0 0.0
    %467 = vmatprep.subr.mxu0 0.0
    %468 = vmatpush1.msra.mxu0 0.0
    %469 = vmatprep.subr.mxu0 0.0
    %470 = vmatpush1.msra.mxu0 0.0
    %471 = vmatprep.subr.mxu0 0.0
    %472 = vmatpush1.msra.mxu0 0.0
    %473 = vmatprep.subr.mxu0 0.0
    %474 = vmatpush1.msra.mxu0 0.0
    %475 = vmatprep.subr.mxu0 0.0
    %476 = vmatpush1.msra.mxu0 0.0
    %477 = vmatprep.subr.mxu0 0.0
    %478 = vmatpush1.msra.mxu0 0.0
    %479 = vmatprep.subr.mxu0 0.0
    %v480 = vand.u32 %v36, 4294901760
    %481 = vmatpush1.msra.mxu0 %v480
    %482 = vmatprep.subr.mxu0 0.0
    %483 = vmatpush2.msra.mxu0 0.0
    %484 = vmatprep.subr.mxu0 0.0
    %485 = vmatpush2.msra.mxu0 0.0
    %486 = vmatprep.subr.mxu0 0.0
    %487 = vmatpush2.msra.mxu0 0.0
    %488 = vmatprep.subr.mxu0 0.0
    %489 = vmatpush2.msra.mxu0 0.0
    %490 = vmatprep.subr.mxu0 0.0
    %491 = vmatpush2.msra.mxu0 0.0
    %492 = vmatprep.subr.mxu0 0.0
    %493 = vmatpush2.msra.mxu0 0.0
    %494 = vmatprep.subr.mxu0 0.0
    %495 = vmatpush2.msra.mxu0 0.0
    %496 = vmatprep.subr.mxu0 0.0
    %497 = vmatpush2.msra.mxu0 0.0
    %498 = vmatprep.subr.mxu0 0.0
    %499 = vmatpush2.msra.mxu0 0.0
    %500 = vmatprep.subr.mxu0 0.0
    %501 = vmatpush2.msra.mxu0 0.0
    %502 = vmatprep.subr.mxu0 0.0
    %503 = vmatpush2.msra.mxu0 0.0
    %504 = vmatprep.subr.mxu0 0.0
    %505 = vmatpush2.msra.mxu0 0.0
    %506 = vmatprep.subr.mxu0 0.0
    %507 = vmatpush2.msra.mxu0 0.0
    %508 = vmatprep.subr.mxu0 0.0
    %509 = vmatpush2.msra.mxu0 0.0
    %510 = vmatprep.subr.mxu0 0.0
    %511 = vmatpush2.msra.mxu0 0.0
    %512 = vmatprep.subr.mxu0 0.0
    %513 = vmatpush2.msra.mxu0 0.0
    %514 = vmatprep.mubr.f32.mxu0 0.0
    %v515 = vand.u32 %v29, 4294901760
    %516 = vmatmul.mubr.f32.gmra.mxu0 %v515
    %v517 = vpop.f32.mrf.mxu0
    %v518 = vadd.f32 %v440, %v517
    %v519 = vpop.f32.mrf.mxu0
    %520 = vmatprep.mubr.f32.mxu0 0.0
    %v521 = vand.u32 %v32, 4294901760
    %522 = vmatmul.mubr.f32.gmra.mxu0 %v521
    %v523 = vpop.f32.mrf.mxu0
    %v524 = vadd.f32 %v446, %v523
    %v525 = vpop.f32.mrf.mxu0
    %526 = vdwg.mxu0
    %v527 = vlaneseq
    %v528 = vshrl.u32 %v527, 7
    %v529 = vadd.s32 %v528, 8
    %v530 = vlaneseq
    %v531 = vand.u32 %v530, 127
    %v532 = vlaneseq
    %v533 = vshrl.u32 %v532, 7
    %v534 = vsub.s32 0, %v533
    %v535 = vrot.slane %v24, %v534
    %vm536 = vcmp.eq.s32.totalorder %v535, %v528
    %vm537 = vcmp.eq.s32.totalorder %v535, %v529
    %v538 = vlaneseq
    %v539 = vshrl.u32 %v538, 7
    %v540 = vsub.s32 0, %v539
    %v541 = vrot.slane %v25, %v540
    %vm542 = vcmp.eq.s32.totalorder %v541, %v528
    %vm543 = vcmp.eq.s32.totalorder %v541, %v529
    %545 = vset.pattern.permute.xlu0 0
    %546 = vperm.xlu0 %545, %v518
    %v547 = vpop.permute.xlu0 %546
    %550 = vset.pattern.permute.xlu0 0
    %551 = vperm.xlu0 %550, %v524
    %v552 = vpop.permute.xlu0 %551
    %v554 = vsel %vm536, %v547, 0.0
    %v555 = vsel %vm537, %v552, 0.0
    %v556 = vadd.f32 %v554, %v555
    %v557 = vrot.slane %v556, 4
    %v558 = vadd.f32 %v556, %v557
    %v559 = vrot.slane %v558, 2
    %v560 = vadd.f32 %v558, %v559
    %v561 = vrot.slane %v560, 1
    %v562 = vadd.f32 %v560, %v561
    %563 = vset.pattern.permute.xlu0 1
    %564 = vperm.xlu0 %563, %v518
    %v565 = vpop.permute.xlu0 %564
    %567 = vset.pattern.permute.xlu0 1
    %568 = vperm.xlu0 %567, %v524
    %v569 = vpop.permute.xlu0 %568
    %v571 = vsel %vm536, %v565, 0.0
    %v572 = vsel %vm537, %v569, 0.0
    %v573 = vadd.f32 %v571, %v572
    %v574 = vrot.slane %v573, 4
    %v575 = vadd.f32 %v573, %v574
    %v576 = vrot.slane %v575, 2
    %v577 = vadd.f32 %v575, %v576
    %v578 = vrot.slane %v577, 1
    %v579 = vadd.f32 %v577, %v578
    %v580 = vsel %vm536, %v562, -1e+30
    %v581 = vsel %vm537, %v562, -1e+30
    %582 = vmax.xlane.f32.xlu0 %v580
    %v583 = vpop.xlane.xlu0 %582
    %584 = vmax.xlane.f32.xlu0 %v581
    %v585 = vpop.xlane.xlu0 %584
    %v586 = vsel %vm536, %v583, 0.0
    %v587 = vsel %vm537, %v585, 0.0
    %v588 = vadd.f32 %v586, %v587
    %v589 = vrot.slane %v588, 4
    %v590 = vadd.f32 %v588, %v589
    %v591 = vrot.slane %v590, 2
    %v592 = vadd.f32 %v590, %v591
    %v593 = vrot.slane %v592, 1
    %v594 = vadd.f32 %v592, %v593
    %v595 = vsub.f32 %v562, %v594
    %v596 = vmul.f32 %v595, 1.442695
    %v597 = vpow.pop %v596
    %v598 = vsel %vm536, %v597, 0.0
    %v599 = vsel %vm537, %v597, 0.0
    %600 = vadd.xlane.f32.xlu0 %v598
    %v601 = vpop.xlane.xlu0 %600
    %602 = vadd.xlane.f32.xlu0 %v599
    %v603 = vpop.xlane.xlu0 %602
    %v604 = vsel %vm536, %v601, 0.0
    %v605 = vsel %vm537, %v603, 0.0
    %v606 = vadd.f32 %v604, %v605
    %v607 = vrot.slane %v606, 4
    %v608 = vadd.f32 %v606, %v607
    %v609 = vrot.slane %v608, 2
    %v610 = vadd.f32 %v608, %v609
    %v611 = vrot.slane %v610, 1
    %v612 = vadd.f32 %v610, %v611
    %v613 = vmul.f32 %v597, 2.0
    %v614 = vmul.f32 %v613, %v579
    %v615 = vmul.f32 %v612, %v26
    %v616 = vrcp.pop %v615
    %v617 = vmul.f32 %v614, %v616
    %vm618 = vcmp.eq.s32.totalorder %v531, %v528
    %vm619 = vcmp.eq.s32.totalorder %v531, %v529
    %v620 = vlaneseq
    %v621 = vshrl.u32 %v620, 7
    %v622 = vsub.s32 0, %v621
    %v623 = vrot.slane %v617, %v622
    %v624 = vsel %vm618, %v623, 0.0
    %v625 = vsel %vm619, %v623, 0.0
    %626 = vadd.xlane.f32.xlu0 %v624
    %v627 = vpop.xlane.xlu0 %626
    %628 = vadd.xlane.f32.xlu0 %v625
    %v629 = vpop.xlane.xlu0 %628
    %v630 = vsel %vm536, %v627, 0.0
    %v631 = vsel %vm537, %v629, 0.0
    %v632 = vsel %vm542, %v627, 0.0
    %v633 = vsel %vm543, %v629, 0.0
    %v634 = vsub.f32 %v630, %v632
    %v635 = vsub.f32 %v631, %v633
    %v636 = vadd.f32 %v634, %v635
    %v637 = vrot.slane %v636, 4
    %v638 = vadd.f32 %v636, %v637
    %v639 = vrot.slane %v638, 2
    %v640 = vadd.f32 %v638, %v639
    %v641 = vrot.slane %v640, 1
    %v642 = vadd.f32 %v640, %v641
    %643 = vst [vmem:[#allocation2] sm:$0x1] %v642
    // Predicated region
    $region22: #{tpu_custom_call.1} parent=1 // pred_check
      _
    $region23: #{tpu_custom_call.1} parent=1 // pred_check_branch
      %645 = sbr.rel (0) target = $region25
    $region24: #{tpu_custom_call.1} parent=1 // pred_region
      %s647 = ssub.s32 16, 16
      %648 = vsyncadd [#allocation3], %s647
      %s650 = sshll.u32 [#allocation2], 4
      %s651 = int_to_ptr.vmem [resolvable:$true] %s650
      %653 = dma.vmem_to_hbm [thread:$0]  %s651, 16, %s5, [#allocation3]
    $region25: #{tpu_custom_call.1} parent=1 // pred_fallthru
      _
    // Predicated region
    $region26: #{tpu_custom_call.1} parent=1 // pred_check
      _
    $region27: #{tpu_custom_call.1} parent=1 // pred_check_branch
      %655 = sbr.rel (0) target = $region29
    $region28: #{tpu_custom_call.1} parent=1 // pred_region
      %656 = dma.done [#allocation3], 16
    $region29: #{tpu_custom_call.1} parent=1 // pred_fallthru
      _
    %657 = vsyncpa [#allocation3], 1

</llo_original>
